<compile_context>
chip_gen: v5e
topology: v5e:2x2
jax: 0.10.0
libtpu: 0.0.40
codegen_flags: <defaults>
</compile_context>

<pallas_src>
import jax
import jax.numpy as jnp
import numpy as np
from jax import lax
from jax.experimental import pallas as pl
from jax.experimental.pallas import tpu as pltpu

_MIB = 1024 * 1024


def _vmem_capacity_bytes():
    """Physical VMEM per TensorCore; conservative 64 MiB fallback (v7x-like)."""
    try:
        return int(pltpu.get_tpu_info().vmem_capacity_bytes)
    except Exception:
        return 64 * _MIB


def _pcc_fused_kernel(x_ref, y_ref, cc_ref):
    """Single-tile path: whole (N, F) matrices resident in VMEM.

    Streams the native-dtype inputs once and computes the row means in-kernel,
    so x/y are read from HBM exactly once with no wrapper-side reduce pass.
    """
    x = x_ref[...].astype(jnp.float32)     # native dtype streamed; f32 math
    y = y_ref[...].astype(jnp.float32)

    # torch.mean(x, dim=1) -> (N,), broadcast RIGHT-ALIGNED (column-indexed).
    mx = jnp.transpose(jnp.mean(x, axis=1, keepdims=True))    # (1, N)
    my = jnp.transpose(jnp.mean(y, axis=1, keepdims=True))

    vx = x - mx                            # sublane broadcast of lane-major mean
    vy = y - my

    sxy = jnp.sum(vx * vy, axis=1, keepdims=True)   # (N, 1) lane reductions
    sxx = jnp.sum(vx * vx, axis=1, keepdims=True)
    syy = jnp.sum(vy * vy, axis=1, keepdims=True)

    # rsqrt(sxx)*rsqrt(syy) keeps the dynamic range of sqrt(sxx)*sqrt(syy)
    # (the product sxx*syy would square it and can over/underflow in f32).
    cc_col = sxy * (lax.rsqrt(sxx) * lax.rsqrt(syy))
    cc_ref[...] = jnp.transpose(cc_col)              # lane-dense (1, N)


def _pcc_rowblock_kernel(mx_ref, my_ref, x_ref, y_ref, cc_ref):
    """Row-tiled path.

    mx_ref/my_ref: (1, F) f32 column-indexed centering vectors (row means of
        the FULL matrices; the reference broadcasts them along the last axis).
    x_ref/y_ref:   (TM, F) row tile of output / target in their native dtype.
    cc_ref:        (1, TM) lane-dense slice of the cc vector for this tile.
    """
    x = x_ref[...].astype(jnp.float32)     # per-tile cast; HBM reads stay native
    y = y_ref[...].astype(jnp.float32)

    vx = x - mx_ref[...]                   # (TM, F) - (1, F) sublane broadcast
    vy = y - my_ref[...]

    sxy = jnp.sum(vx * vy, axis=1, keepdims=True)   # (TM, 1)
    sxx = jnp.sum(vx * vx, axis=1, keepdims=True)
    syy = jnp.sum(vy * vy, axis=1, keepdims=True)

    cc_col = sxy * (lax.rsqrt(sxx) * lax.rsqrt(syy))
    # (TM, 1) -> (1, TM) is a tiny relayout, hidden under the input-tile DMA.
    cc_ref[...] = jnp.transpose(cc_col)


def pcc(output, target, *, block_rows=None):
    """Pallas TPU implementation of PCC(dim=1).forward(output, target).

    Args:
      output, target: arrays of shape (N, F) with N == F (required by the
        reference module's right-aligned broadcasting). Any float dtype; the
        inputs are streamed in their native dtype and accumulated in f32.
      block_rows: optional explicit row-tile size (forces the tiled path).
    Returns:
      (cc, mean_cc, std_cc): shapes (N,), (), ().
    """
    assert output.shape == target.shape and output.ndim == 2
    n, f = output.shape
    assert n == f, "PyTorch reference broadcasting requires square inputs (N == F)."

    in_bytes = jnp.dtype(output.dtype).itemsize
    vmem = _vmem_capacity_bytes()
    # Scoped-VMEM limit: generous but always <= physical (48 MiB on 64 MiB
    # v7x-class parts, 96 MiB on 128 MiB v5e/v6e-class parts).
    vmem_limit = int(min(vmem * 3 // 4, 96 * _MIB))

    # Single-tile (fused in-kernel mean) path whenever the whole working set
    # (native inputs + f32 casts/temporaries, conservatively ~in_bytes+8 per
    # element per matrix) fits comfortably in this generation's VMEM.
    fits_single_tile = 2 * n * f * (in_bytes + 8) <= vmem // 2

    if block_rows is None and fits_single_tile:
        cc_row = pl.pallas_call(
            _pcc_fused_kernel,
            out_shape=jax.ShapeDtypeStruct((1, n), jnp.float32),
            grid=(1,),
            in_specs=[
                pl.BlockSpec((n, f), lambda i: (0, 0)),   # output (native dtype)
                pl.BlockSpec((n, f), lambda i: (0, 0)),   # target (native dtype)
            ],
            out_specs=pl.BlockSpec((1, n), lambda i: (0, 0)),
            compiler_params=pltpu.CompilerParams(
                dimension_semantics=("arbitrary",),
                vmem_limit_bytes=vmem_limit,
            ),
        )(output, target)
    else:
        # The column-indexed centering needs the row means of the FULL matrix
        # for every tile, so they are precomputed here. XLA fuses the f32
        # convert into the reduce, so x/y are still read from HBM natively.
        mx = jnp.mean(output.astype(jnp.float32), axis=1).reshape(1, n)
        my = jnp.mean(target.astype(jnp.float32), axis=1).reshape(1, n)

        if block_rows is not None:
            tm = int(block_rows)
        else:
            big_vmem = vmem >= 96 * _MIB
            # Per-input f32 working-slab budget: 4 MiB on 128 MiB parts
            # (v5e/v6e), 2 MiB on 64 MiB-per-TC parts (v7x).
            tile_bytes = (4 if big_vmem else 2) * _MIB
            tm_cap = 1024 if big_vmem else 512
            tm = int(max(128, min(tm_cap, (tile_bytes // (4 * f)) // 128 * 128)))
        grid_m = pl.cdiv(n, tm)

        cc_row = pl.pallas_call(
            _pcc_rowblock_kernel,
            out_shape=jax.ShapeDtypeStruct((1, n), jnp.float32),
            grid=(grid_m,),
            in_specs=[
                pl.BlockSpec((1, n), lambda i: (0, 0)),    # mx (replicated, f32)
                pl.BlockSpec((1, n), lambda i: (0, 0)),    # my (replicated, f32)
                pl.BlockSpec((tm, f), lambda i: (i, 0)),   # output row tile
                pl.BlockSpec((tm, f), lambda i: (i, 0)),   # target row tile
            ],
            out_specs=pl.BlockSpec((1, tm), lambda i: (0, i)),  # lane-dense cc
            compiler_params=pltpu.CompilerParams(
                dimension_semantics=("parallel",),
                vmem_limit_bytes=vmem_limit,
            ),
        )(mx, my, output, target)

    cc = cc_row.reshape(n)
    # Scalar epilogue (O(N)) kept in the wrapper: precision-safe two-pass std
    # and off the kernel critical path. torch.std default is unbiased (n-1).
    mean_cc = jnp.mean(cc)
    std_cc = jnp.std(cc, ddof=1)
    return cc, mean_cc, std_cc


def _pcc_ref(output, target):
    """Pure-JAX reference mirroring the PyTorch module exactly (f32 math)."""
    vx = output - jnp.mean(output, axis=1)        # same right-aligned broadcast
    vy = target - jnp.mean(target, axis=1)
    cc = jnp.sum(vx * vy, axis=1) / (
        jnp.sqrt(jnp.sum(vx ** 2, axis=1)) * jnp.sqrt(jnp.sum(vy ** 2, axis=1))
    )
    mean_cc = jnp.mean(cc)
    std_cc = jnp.std(cc, ddof=1)
    return cc, mean_cc, std_cc


def _check(n, key, dtype=jnp.float32, block_rows=None, rtol=1e-4, atol=1e-5):
    k1, k2 = jax.random.split(key)
    x = jax.random.normal(k1, (n, n), dtype=jnp.float32)
    y = 0.5 * x + 0.5 * jax.random.normal(k2, (n, n), dtype=jnp.float32)
    x = x.astype(dtype)
    y = y.astype(dtype)

    cc, mean_cc, std_cc = pcc(x, y, block_rows=block_rows)
    jax.block_until_ready((cc, mean_cc, std_cc))

    cc_r, mean_r, std_r = _pcc_ref(x.astype(jnp.float32), y.astype(jnp.float32))
    np.testing.assert_allclose(np.asarray(cc), np.asarray(cc_r), rtol=rtol, atol=atol)
    np.testing.assert_allclose(np.asarray(mean_cc), np.asarray(mean_r), rtol=rtol, atol=atol)
    np.testing.assert_allclose(np.asarray(std_cc), np.asarray(std_r), rtol=rtol, atol=atol)


if __name__ == "__main__":
    key = jax.random.PRNGKey(0)
    k1, k2, k3, k4 = jax.random.split(key, 4)

    # Production-like small square matrix -> single-tile fused-mean path.
    _check(16, k1)
    # bf16 inputs streamed in their native dtype (halved HBM traffic).
    _check(16, k2, dtype=jnp.bfloat16, rtol=1e-3, atol=1e-4)
    # Medium square matrix, still the single-tile path on every generation.
    _check(256, k3)
    # Force the row-tiled, double-buffered pipelined path (grid_m = 4).
    _check(512, k4, block_rows=128)

    print("KERNEL_OK")
</pallas_src>

<mosaic_0001>
module attributes {stable_mosaic.version = 11 : i64} {
  func.func @_pcc_fused_kernel(%arg0: i32, %arg1: memref<16x16xf32, #tpu.memory_space<vmem>>, %arg2: memref<16x16xf32, #tpu.memory_space<vmem>>, %arg3: memref<1x16xf32, #tpu.memory_space<vmem>>) attributes {dimension_semantics = [#tpu.dimension_semantics<arbitrary>], iteration_bounds = array<i64: 1>, scalar_prefetch = 0 : i64, scratch_operands = 0 : i64, tpu.core_type = #tpu.core_type<tc>, window_params = [{pipeline_mode = #tpu.pipeline_mode<synchronous>, transform_indices = @transform_0, window_bounds = array<i64: 16, 16>}, {pipeline_mode = #tpu.pipeline_mode<synchronous>, transform_indices = @transform_1, window_bounds = array<i64: 16, 16>}, {pipeline_mode = #tpu.pipeline_mode<synchronous>, transform_indices = @transform_2, window_bounds = array<i64: 1, 16>}]} {
    %c0 = arith.constant 0 : index
    %c0_0 = arith.constant 0 : index
    %0 = vector.load %arg1[%c0, %c0_0] : memref<16x16xf32, #tpu.memory_space<vmem>>, vector<16x16xf32>
    %c0_1 = arith.constant 0 : index
    %c0_2 = arith.constant 0 : index
    %1 = vector.load %arg2[%c0_1, %c0_2] : memref<16x16xf32, #tpu.memory_space<vmem>>, vector<16x16xf32>
    %cst = arith.constant dense<0.000000e+00> : vector<16xf32>
    %2 = vector.multi_reduction <add>, %0, %cst [1] : vector<16x16xf32> to vector<16xf32>
    %3 = vector.shape_cast %2 : vector<16xf32> to vector<16x1xf32>
    %cst_3 = arith.constant 1.600000e+01 : f32
    %4 = vector.broadcast %cst_3 : f32 to vector<16x1xf32>
    %5 = arith.divf %3, %4 : vector<16x1xf32>
    %6 = tpu.transpose %5, [1, 0] : vector<16x1xf32> -> vector<1x16xf32>
    %cst_4 = arith.constant dense<0.000000e+00> : vector<16xf32>
    %7 = vector.multi_reduction <add>, %1, %cst_4 [1] : vector<16x16xf32> to vector<16xf32>
    %8 = vector.shape_cast %7 : vector<16xf32> to vector<16x1xf32>
    %cst_5 = arith.constant 1.600000e+01 : f32
    %9 = vector.broadcast %cst_5 : f32 to vector<16x1xf32>
    %10 = arith.divf %8, %9 : vector<16x1xf32>
    %11 = tpu.transpose %10, [1, 0] : vector<16x1xf32> -> vector<1x16xf32>
    %12 = vector.broadcast %6 : vector<1x16xf32> to vector<16x16xf32>
    %13 = arith.subf %0, %12 : vector<16x16xf32>
    %14 = vector.broadcast %11 : vector<1x16xf32> to vector<16x16xf32>
    %15 = arith.subf %1, %14 : vector<16x16xf32>
    %16 = arith.mulf %13, %15 : vector<16x16xf32>
    %cst_6 = arith.constant dense<0.000000e+00> : vector<16xf32>
    %17 = vector.multi_reduction <add>, %16, %cst_6 [1] : vector<16x16xf32> to vector<16xf32>
    %18 = vector.shape_cast %17 : vector<16xf32> to vector<16x1xf32>
    %19 = arith.mulf %13, %13 : vector<16x16xf32>
    %cst_7 = arith.constant dense<0.000000e+00> : vector<16xf32>
    %20 = vector.multi_reduction <add>, %19, %cst_7 [1] : vector<16x16xf32> to vector<16xf32>
    %21 = vector.shape_cast %20 : vector<16xf32> to vector<16x1xf32>
    %22 = arith.mulf %15, %15 : vector<16x16xf32>
    %cst_8 = arith.constant dense<0.000000e+00> : vector<16xf32>
    %23 = vector.multi_reduction <add>, %22, %cst_8 [1] : vector<16x16xf32> to vector<16xf32>
    %24 = vector.shape_cast %23 : vector<16xf32> to vector<16x1xf32>
    %25 = math.rsqrt %21 : vector<16x1xf32>
    %26 = math.rsqrt %24 : vector<16x1xf32>
    %27 = arith.mulf %25, %26 : vector<16x1xf32>
    %28 = arith.mulf %18, %27 : vector<16x1xf32>
    %29 = tpu.transpose %28, [1, 0] : vector<16x1xf32> -> vector<1x16xf32>
    %c0_9 = arith.constant 0 : index
    %c0_10 = arith.constant 0 : index
    %30 = vector.load %arg3[%c0_9, %c0_10] : memref<1x16xf32, #tpu.memory_space<vmem>>, vector<1x16xf32>
    tpu.vector_store %arg3[%c0_9, %c0_10], %29 {strides = array<i32>} : memref<1x16xf32, #tpu.memory_space<vmem>>, vector<1x16xf32>,
    return
  }
  func.func @transform_0(%arg0: i32) -> (i32, i32) {
    %c0_i32 = arith.constant 0 : i32
    %c0_i32_0 = arith.constant 0 : i32
    %c0_i32_1 = arith.constant 0 : i32
    return %c0_i32, %c0_i32_0 : i32, i32
  }
  func.func @transform_1(%arg0: i32) -> (i32, i32) {
    %c0_i32 = arith.constant 0 : i32
    %c0_i32_0 = arith.constant 0 : i32
    %c0_i32_1 = arith.constant 0 : i32
    return %c0_i32, %c0_i32_0 : i32, i32
  }
  func.func @transform_2(%arg0: i32) -> (i32, i32) {
    %c0_i32 = arith.constant 0 : i32
    %c0_i32_0 = arith.constant 0 : i32
    %c0_i32_1 = arith.constant 0 : i32
    return %c0_i32, %c0_i32_0 : i32, i32
  }
}

</mosaic_0001>

<llo_original>
// kernel: tpu_custom_call.1
$region0: #{tpu_custom_call.1}
  #allocation0 [shape = 'u32[]', space=smem, size = 0x4, offset = 0x4, fixed_abs, tag = 'smem constant byte address 0x4 - core index']
  #allocation1 [shape = 'u32[72,128]{1,0:T(1,128)}', space=vmem, size = 0x9000, scoped, tag = 'internal scratch']
  %s0 = inlined_call_operand.hbm [shape: f32[16,16], index: 0, kind: input, shape index: {}]
  %s1 = inlined_call_operand.hbm [shape: f32[16,16], index: 1, kind: input, shape index: {}]
  %s2 = inlined_call_operand.hbm [shape: f32[1,16], index: 2, kind: output, shape index: {}]
  %s3 = sld [smem:[#allocation0]]
  $region26: #{tpu_custom_call.1} parent=0
    _
  %s5 = ssub.s32 1, %s3
  %s6 = scalar_select 0, %s5, %s3
  $region1: #{tpu_custom_call.1} parent=0
    #allocation2 [shape = 'u8[8192]{0}', space=vmem, size = 0x2000, scoped, tag = 'input window, operand 0, single buffered']
    #allocation3 [shape = 's32[1]{0}', space=sflag, size = 0x4, scoped, tag = 'scoped memory for tpu_custom_call.1']
    #allocation4 [shape = 's32[1]{0}', space=sflag, size = 0x4, scoped, tag = 'scoped memory for tpu_custom_call.1']
    #allocation5 [shape = 'u8[8192]{0}', space=vmem, size = 0x2000, scoped, tag = 'input window, operand 1, single buffered']
    #allocation6 [shape = 's32[1]{0}', space=sflag, size = 0x4, scoped, tag = 'scoped memory for tpu_custom_call.1']
    #allocation7 [shape = 'u8[512]{0}', space=vmem, size = 0x400, scoped, tag = 'output window, operand 0, single buffered']
    %7 = vsyncpa [#allocation3], 0
    %8 = vsyncpa [#allocation6], 0
    %9 = vsyncpa [#allocation4], 0
    // Predicated region
    $region2: #{tpu_custom_call.1} parent=1 // pred_check
      _
    $region3: #{tpu_custom_call.1} parent=1 // pred_check_branch
      %11 = sbr.rel (0) target = $region5
    $region4: #{tpu_custom_call.1} parent=1 // pred_region
      %13 = vsyncadd [#allocation3], 0
      %s14 = sshll.u32 %s0, 4
      %s15 = int_to_ptr.hbm [resolvable:$true] %s14
      %s16 = sshll.u32 [#allocation2], 4
      %s17 = int_to_ptr.vmem [resolvable:$true] %s16
      %22 = dma.hbm_to_vmem [thread:$0]  %s15, 256, %s17, [#allocation3], 128, 128, 8
    $region5: #{tpu_custom_call.1} parent=1 // pred_fallthru
      _
    // Predicated region
    $region6: #{tpu_custom_call.1} parent=1 // pred_check
      _
    $region7: #{tpu_custom_call.1} parent=1 // pred_check_branch
      %24 = sbr.rel (0) target = $region9
    $region8: #{tpu_custom_call.1} parent=1 // pred_region
      %26 = vsyncadd [#allocation6], 0
      %s27 = sshll.u32 %s1, 4
      %s28 = int_to_ptr.hbm [resolvable:$true] %s27
      %s29 = sshll.u32 [#allocation5], 4
      %s30 = int_to_ptr.vmem [resolvable:$true] %s29
      %35 = dma.hbm_to_vmem [thread:$0]  %s28, 256, %s30, [#allocation6], 128, 128, 8
    $region9: #{tpu_custom_call.1} parent=1 // pred_fallthru
      _
    // Predicated region
    $region10: #{tpu_custom_call.1} parent=1 // pred_check
      _
    $region11: #{tpu_custom_call.1} parent=1 // pred_check_branch
      %37 = sbr.rel (0) target = $region13
    $region12: #{tpu_custom_call.1} parent=1 // pred_region
      %39 = dma.done [#allocation3], 256
    $region13: #{tpu_custom_call.1} parent=1 // pred_fallthru
      _
    // Predicated region
    $region14: #{tpu_custom_call.1} parent=1 // pred_check
      _
    $region15: #{tpu_custom_call.1} parent=1 // pred_check_branch
      %41 = sbr.rel (0) target = $region17
    $region16: #{tpu_custom_call.1} parent=1 // pred_region
      %43 = dma.done [#allocation6], 256
    $region17: #{tpu_custom_call.1} parent=1 // pred_fallthru
      _
    %v44 = vld [vmem:[#allocation2] sm:$0xff]
    %v45 = vld [vmem:[#allocation2 + $0x8] sm:$0xff]
    %v46 = vld [vmem:[#allocation5] sm:$0xff]
    %v47 = vld [vmem:[#allocation5 + $0x8] sm:$0xff]
    %vm48 = vcmask 130048
    %v49 = vsel %vm48, %v44, 0.0
    %50 = vadd.xlane.f32.xlu0 %v49
    %v51 = vpop.xlane.xlu0 %50
    %v52 = vsel %vm48, %v45, 0.0
    %53 = vadd.xlane.f32.xlu0 %v52
    %v54 = vpop.xlane.xlu0 %53
    %v55 = vrcp.pop 16.0
    %v56 = vmul.f32 16.0, %v55
    %v57 = vsub.f32 1.0, %v56
    %v58 = vmul.f32 %v55, %v57
    %v59 = vadd.f32 %v55, %v58
    %vm60 = vweird.f32 %v55
    %v61 = vsel %vm60, %v55, %v59
    %v62 = vmul.f32 %v51, %v61
    %v63 = vmul.f32 %v54, %v61
    %64 = vxpose.xlu0.b32.start [1/16] %v62, 128
    %65 = vxpose.xlu0.b32.cont [2/16] %v63, 128
    %66 = vxpose.xlu0.b32.cont [3/16] 0.0, 128
    %67 = vxpose.xlu0.b32.cont [4/16] 0.0, 128
    %68 = vxpose.xlu0.b32.cont [5/16] 0.0, 128
    %69 = vxpose.xlu0.b32.cont [6/16] 0.0, 128
    %70 = vxpose.xlu0.b32.cont [7/16] 0.0, 128
    %71 = vxpose.xlu0.b32.cont [8/16] 0.0, 128
    %72 = vxpose.xlu0.b32.cont [9/16] 0.0, 128
    %73 = vxpose.xlu0.b32.cont [10/16] 0.0, 128
    %74 = vxpose.xlu0.b32.cont [11/16] 0.0, 128
    %75 = vxpose.xlu0.b32.cont [12/16] 0.0, 128
    %76 = vxpose.xlu0.b32.cont [13/16] 0.0, 128
    %77 = vxpose.xlu0.b32.cont [14/16] 0.0, 128
    %78 = vxpose.xlu0.b32.cont [15/16] 0.0, 128
    %79 = vxpose.xlu0.b32.end [16/16] 0.0, 128
    %v80 = vpop.trf.xlu0
    %v81 = vpop.trf.xlu0
    %v82 = vpop.trf.xlu0
    %v83 = vpop.trf.xlu0
    %v84 = vpop.trf.xlu0
    %v85 = vpop.trf.xlu0
    %v86 = vpop.trf.xlu0
    %v87 = vpop.trf.xlu0
    %v88 = vpop.trf.xlu0
    %v89 = vpop.trf.xlu0
    %v90 = vpop.trf.xlu0
    %v91 = vpop.trf.xlu0
    %v92 = vpop.trf.xlu0
    %v93 = vpop.trf.xlu0
    %v94 = vpop.trf.xlu0
    %v95 = vpop.trf.xlu0
    %v96 = vsel %vm48, %v46, 0.0
    %97 = vadd.xlane.f32.xlu0 %v96
    %v98 = vpop.xlane.xlu0 %97
    %v99 = vsel %vm48, %v47, 0.0
    %100 = vadd.xlane.f32.xlu0 %v99
    %v101 = vpop.xlane.xlu0 %100
    %v102 = vmul.f32 %v98, %v61
    %v103 = vmul.f32 %v101, %v61
    %104 = vxpose.xlu0.b32.start [1/16] %v102, 128
    %105 = vxpose.xlu0.b32.cont [2/16] %v103, 128
    %106 = vxpose.xlu0.b32.cont [3/16] 0.0, 128
    %107 = vxpose.xlu0.b32.cont [4/16] 0.0, 128
    %108 = vxpose.xlu0.b32.cont [5/16] 0.0, 128
    %109 = vxpose.xlu0.b32.cont [6/16] 0.0, 128
    %110 = vxpose.xlu0.b32.cont [7/16] 0.0, 128
    %111 = vxpose.xlu0.b32.cont [8/16] 0.0, 128
    %112 = vxpose.xlu0.b32.cont [9/16] 0.0, 128
    %113 = vxpose.xlu0.b32.cont [10/16] 0.0, 128
    %114 = vxpose.xlu0.b32.cont [11/16] 0.0, 128
    %115 = vxpose.xlu0.b32.cont [12/16] 0.0, 128
    %116 = vxpose.xlu0.b32.cont [13/16] 0.0, 128
    %117 = vxpose.xlu0.b32.cont [14/16] 0.0, 128
    %118 = vxpose.xlu0.b32.cont [15/16] 0.0, 128
    %119 = vxpose.xlu0.b32.end [16/16] 0.0, 128
    %v120 = vpop.trf.xlu0
    %v121 = vpop.trf.xlu0
    %v122 = vpop.trf.xlu0
    %v123 = vpop.trf.xlu0
    %v124 = vpop.trf.xlu0
    %v125 = vpop.trf.xlu0
    %v126 = vpop.trf.xlu0
    %v127 = vpop.trf.xlu0
    %v128 = vpop.trf.xlu0
    %v129 = vpop.trf.xlu0
    %v130 = vpop.trf.xlu0
    %v131 = vpop.trf.xlu0
    %v132 = vpop.trf.xlu0
    %v133 = vpop.trf.xlu0
    %v134 = vpop.trf.xlu0
    %v135 = vpop.trf.xlu0
    %v136 = vperm.slane %v80, 0
    %v137 = vsub.f32 %v44, %v136
    %v138 = vsub.f32 %v45, %v136
    %v139 = vperm.slane %v120, 0
    %v140 = vsub.f32 %v46, %v139
    %v141 = vsub.f32 %v47, %v139
    %v142 = vmul.f32 %v137, %v140
    %v143 = vmul.f32 %v138, %v141
    %v144 = vsel %vm48, %v142, 0.0
    %145 = vadd.xlane.f32.xlu0 %v144
    %v146 = vpop.xlane.xlu0 %145
    %v147 = vsel %vm48, %v143, 0.0
    %148 = vadd.xlane.f32.xlu0 %v147
    %v149 = vpop.xlane.xlu0 %148
    %v150 = vmul.f32 %v137, %v137
    %v151 = vmul.f32 %v138, %v138
    %v152 = vsel %vm48, %v150, 0.0
    %153 = vadd.xlane.f32.xlu0 %v152
    %v154 = vpop.xlane.xlu0 %153
    %v155 = vsel %vm48, %v151, 0.0
    %156 = vadd.xlane.f32.xlu0 %v155
    %v157 = vpop.xlane.xlu0 %156
    %v158 = vmul.f32 %v140, %v140
    %v159 = vmul.f32 %v141, %v141
    %v160 = vsel %vm48, %v158, 0.0
    %161 = vadd.xlane.f32.xlu0 %v160
    %v162 = vpop.xlane.xlu0 %161
    %v163 = vsel %vm48, %v159, 0.0
    %164 = vadd.xlane.f32.xlu0 %v163
    %v165 = vpop.xlane.xlu0 %164
    %v166 = vrsqrt.pop %v154
    %v167 = vmul.f32 %v166, %v154
    %v168 = vmul.f32 %v167, %v166
    %v169 = vmul.f32 0.5, %v168
    %v170 = vsub.f32 1.5, %v169
    %v171 = vmul.f32 %v166, %v170
    %vm172 = vweird.f32 %v154
    %vm173 = vweird.f32 %v166
    %vm174 = vmor %vm172, %vm173
    %v175 = vsel %vm174, %v166, %v171
    %v176 = vrsqrt.pop %v157
    %v177 = vmul.f32 %v176, %v157
    %v178 = vmul.f32 %v177, %v176
    %v179 = vmul.f32 0.5, %v178
    %v180 = vsub.f32 1.5, %v179
    %v181 = vmul.f32 %v176, %v180
    %vm182 = vweird.f32 %v157
    %vm183 = vweird.f32 %v176
    %vm184 = vmor %vm182, %vm183
    %v185 = vsel %vm184, %v176, %v181
    %v186 = vrsqrt.pop %v162
    %v187 = vmul.f32 %v186, %v162
    %v188 = vmul.f32 %v187, %v186
    %v189 = vmul.f32 0.5, %v188
    %v190 = vsub.f32 1.5, %v189
    %v191 = vmul.f32 %v186, %v190
    %vm192 = vweird.f32 %v162
    %vm193 = vweird.f32 %v186
    %vm194 = vmor %vm192, %vm193
    %v195 = vsel %vm194, %v186, %v191
    %v196 = vrsqrt.pop %v165
    %v197 = vmul.f32 %v196, %v165
    %v198 = vmul.f32 %v197, %v196
    %v199 = vmul.f32 0.5, %v198
    %v200 = vsub.f32 1.5, %v199
    %v201 = vmul.f32 %v196, %v200
    %vm202 = vweird.f32 %v165
    %vm203 = vweird.f32 %v196
    %vm204 = vmor %vm202, %vm203
    %v205 = vsel %vm204, %v196, %v201
    %v206 = vmul.f32 %v175, %v195
    %v207 = vmul.f32 %v185, %v205
    %v208 = vmul.f32 %v146, %v206
    %v209 = vmul.f32 %v149, %v207
    %210 = vxpose.xlu0.b32.start [1/16] %v208, 128
    %211 = vxpose.xlu0.b32.cont [2/16] %v209, 128
    %212 = vxpose.xlu0.b32.cont [3/16] 0.0, 128
    %213 = vxpose.xlu0.b32.cont [4/16] 0.0, 128
    %214 = vxpose.xlu0.b32.cont [5/16] 0.0, 128
    %215 = vxpose.xlu0.b32.cont [6/16] 0.0, 128
    %216 = vxpose.xlu0.b32.cont [7/16] 0.0, 128
    %217 = vxpose.xlu0.b32.cont [8/16] 0.0, 128
    %218 = vxpose.xlu0.b32.cont [9/16] 0.0, 128
    %219 = vxpose.xlu0.b32.cont [10/16] 0.0, 128
    %220 = vxpose.xlu0.b32.cont [11/16] 0.0, 128
    %221 = vxpose.xlu0.b32.cont [12/16] 0.0, 128
    %222 = vxpose.xlu0.b32.cont [13/16] 0.0, 128
    %223 = vxpose.xlu0.b32.cont [14/16] 0.0, 128
    %224 = vxpose.xlu0.b32.cont [15/16] 0.0, 128
    %225 = vxpose.xlu0.b32.end [16/16] 0.0, 128
    %v226 = vpop.trf.xlu0
    %v227 = vpop.trf.xlu0
    %v228 = vpop.trf.xlu0
    %v229 = vpop.trf.xlu0
    %v230 = vpop.trf.xlu0
    %v231 = vpop.trf.xlu0
    %v232 = vpop.trf.xlu0
    %v233 = vpop.trf.xlu0
    %v234 = vpop.trf.xlu0
    %v235 = vpop.trf.xlu0
    %v236 = vpop.trf.xlu0
    %v237 = vpop.trf.xlu0
    %v238 = vpop.trf.xlu0
    %v239 = vpop.trf.xlu0
    %v240 = vpop.trf.xlu0
    %v241 = vpop.trf.xlu0
    %vm242 = vcmask 122880
    %243 = vst.msk [vmem:[#allocation7] sm:$0x1] %vm242, %v226
    // Predicated region
    $region18: #{tpu_custom_call.1} parent=1 // pred_check
      _
    $region19: #{tpu_custom_call.1} parent=1 // pred_check_branch
      %245 = sbr.rel (0) target = $region21
    $region20: #{tpu_custom_call.1} parent=1 // pred_region
      %247 = vsyncadd [#allocation4], 0
      %s249 = sshll.u32 [#allocation7], 4
      %s250 = int_to_ptr.vmem [resolvable:$true] %s249
      %s251 = sshll.u32 %s2, 4
      %s252 = int_to_ptr.hbm [resolvable:$true] %s251
      %254 = dma.vmem_to_hbm [thread:$0]  %s250, 16, %s252, [#allocation4]
    $region21: #{tpu_custom_call.1} parent=1 // pred_fallthru
      _
    // Predicated region
    $region22: #{tpu_custom_call.1} parent=1 // pred_check
      _
    $region23: #{tpu_custom_call.1} parent=1 // pred_check_branch
      %256 = sbr.rel (0) target = $region25
    $region24: #{tpu_custom_call.1} parent=1 // pred_region
      %258 = dma.done [#allocation4], 16
    $region25: #{tpu_custom_call.1} parent=1 // pred_fallthru
      _
    %259 = vsyncpa [#allocation3], 1
    %260 = vsyncpa [#allocation6], 1
    %261 = vsyncpa [#allocation4], 1

</llo_original>
